<compile_context>
chip_gen: v6e
topology: v6e:2x2x1
jax: 0.10.0
libtpu: 0.0.40
codegen_flags: <defaults>
</compile_context>

<pallas_src>
import functools

import numpy as np
import jax
import jax.numpy as jnp
from jax.experimental import pallas as pl
from jax.experimental.pallas import tpu as pltpu


def _upsample_kernel(x_ref, up_ref, dn_ref, o_ref, *, parity_offset):
    """Process one (C, Ht, W/2) row tile of one frame.

    x_ref:  (1, C, Ht, Wh) f32  -- half-width input rows of this tile
    up_ref: (1, C, 8,  Wh) f32  -- 8-row slab whose LAST row is the row above the tile
    dn_ref: (1, C, 8,  Wh) f32  -- 8-row slab whose FIRST row is the row below the tile
    o_ref:  (1, C, 2, Ht, Wh) u8 -- axis 2 = even(0)/odd(1) output-column plane
    """
    c, ht, wh = x_ref.shape[1], x_ref.shape[2], x_ref.shape[3]
    n = pl.program_id(0)                      # frame index within the batch
    r = pl.program_id(1)                      # row-tile index
    last_r = pl.num_programs(1) - 1
    parity = (n + parity_offset) % 2          # frame parity f % 2

    x = x_ref[0]                              # (C, Ht, Wh) f32

    # Row halos; zero at the frame border (== F.conv2d padding=1).
    top = up_ref[0, :, 7:8, :] * (r > 0).astype(x.dtype)        # row r*Ht - 1
    bot = dn_ref[0, :, 0:1, :] * (r < last_r).astype(x.dtype)   # row (r+1)*Ht

    # Vertical neighbour sum x[h-1, k] + x[h+1, k]   (sublane shifts).
    xu = jnp.concatenate([top, x[:, : ht - 1, :]], axis=1)
    xd = jnp.concatenate([x[:, 1:, :], bot], axis=1)
    xv = xu + xd

    # Horizontal neighbours in half-width (lane) space, zero at frame borders.
    zcol = jnp.zeros((c, ht, 1), dtype=x.dtype)
    xl = jnp.concatenate([zcol, x[:, :, : wh - 1]], axis=2)     # x[h, k-1]
    xr = jnp.concatenate([x[:, :, 1:], zcol], axis=2)           # x[h, k+1]

    # Cross averages for missing pixels of the two output-column phases.
    # even output column w=2k  : neighbours are x[h-1,k], x[h+1,k], x[h,k-1], x[h,k]
    # odd  output column w=2k+1: neighbours are x[h-1,k], x[h+1,k], x[h,k],   x[h,k+1]
    conv_even = (xv + xl + x) * 0.25
    conv_odd = (xv + x + xr) * 0.25

    # Checkerboard phase: with frame parity p, rows where (h + p) is odd carry
    # their input sample in the EVEN output columns, otherwise in the ODD ones.
    # (At "present" positions the cross average is identically zero, so this
    #  parity select is bit-exact with the reference's `where(y == 0, conv, y)`.)
    h_idx = jax.lax.broadcasted_iota(jnp.int32, (c, ht, wh), 1)
    present_even = ((h_idx + parity) % 2) == 1

    even_cols = jnp.where(present_even, x, conv_even)
    odd_cols = jnp.where(present_even, conv_odd, x)

    # Truncating cast to uint8 in-kernel (values are in [0, 255]); lane-dense stores.
    o_ref[0, :, 0, :, :] = even_cols.astype(jnp.int32).astype(jnp.uint8)
    o_ref[0, :, 1, :, :] = odd_cols.astype(jnp.int32).astype(jnp.uint8)


def _pick_row_tile(h: int) -> int:
    # Row tiles keep VMEM usage small (v7x has 64 MiB) while amortising the
    # ~0.35us per-grid-step overhead.  Multiples of 32 keep the uint8 output on
    # native (32, 128) tiles; the 8-row halo slabs need multiples of 8.
    for t in (256, 128, 64, 32):
        if h > t and h % t == 0:
            return t
    return h  # single row tile covering the whole height


@functools.partial(jax.jit, static_argnames=("first_frame_index",))
def upsample_video(x, first_frame_index: int = 0):
    """JAX/Pallas equivalent of ConvolvedAverageModel.upsample_video, batched
    over frames; frame i uses parity (first_frame_index + i) % 2.

    Args:
      x: (N, H, W_half, C) float32 checkerboard-subsampled frames.
    Returns:
      (N, H, 2*W_half, C) uint8 upscaled frames.
    """
    n_frames, h, w_half, c = x.shape
    if h < 8:
        raise ValueError("frame height must be at least 8 rows")
    w = 2 * w_half

    # Planar (N, C, H, W/2): puts W/2 on the lane axis for the kernel.
    # TODO(synk): a fully planar end-to-end pipeline would avoid this f32
    # (half-width) input transpose; the output transpose below is done on uint8.
    x_p = jnp.transpose(x.astype(jnp.float32), (0, 3, 1, 2))

    ht = _pick_row_tile(h)
    n_row_tiles = h // ht
    hb = max(ht // 8, 1)                      # halo-slab block stride per row tile
    last_halo_block = max(h // 8 - 1, 0)

    kernel = functools.partial(
        _upsample_kernel, parity_offset=int(first_frame_index) % 2)

    out5 = pl.pallas_call(
        kernel,
        out_shape=jax.ShapeDtypeStruct((n_frames, c, 2, h, w_half), jnp.uint8),
        grid=(n_frames, n_row_tiles),
        in_specs=[
            # The row tile itself.
            pl.BlockSpec((1, c, ht, w_half), lambda n, r: (n, 0, r, 0)),
            # 8-row slab containing the row just above the tile (clamped at r=0,
            # content is masked to zero inside the kernel there).
            pl.BlockSpec((1, c, 8, w_half),
                         lambda n, r: (n, 0, jnp.maximum(r * hb - 1, 0), 0)),
            # 8-row slab containing the row just below the tile (clamped / masked
            # at the last row tile).
            pl.BlockSpec((1, c, 8, w_half),
                         lambda n, r: (n, 0, jnp.minimum((r + 1) * hb,
                                                         last_halo_block), 0)),
        ],
        out_specs=pl.BlockSpec((1, c, 2, ht, w_half),
                               lambda n, r: (n, 0, 0, r, 0)),
        compiler_params=pltpu.CompilerParams(
            dimension_semantics=("parallel", "parallel"),
            vmem_limit_bytes=64 * 1024 * 1024,
        ),
    )(x_p, x_p, x_p)

    # Single uint8 relayout: interleave even/odd column planes AND go planar->NHWC.
    return jnp.transpose(out5, (0, 3, 4, 2, 1)).reshape(n_frames, h, w, c)


def _ref_upsample_video(x_np, first_frame_index=0):
    """Pure-numpy reference mirroring the PyTorch upsample_video per frame."""
    n_frames, h, w_half, c = x_np.shape
    w = 2 * w_half
    out = np.zeros((n_frames, h, w, c), dtype=np.uint8)
    for i in range(n_frames):
        f = first_frame_index + i
        xf = x_np[i:i + 1].astype(np.float32)
        y = np.zeros((1, h, w, c), dtype=np.float32)
        if f % 2 == 0:
            y[:, ::2, 1::2] = xf[:, ::2]
            y[:, 1::2, ::2] = xf[:, 1::2]
        else:
            y[:, ::2, ::2] = xf[:, ::2]
            y[:, 1::2, 1::2] = xf[:, 1::2]
        yp = np.transpose(y, (0, 3, 1, 2))                    # (1, C, H, W)
        pad = np.pad(yp, ((0, 0), (0, 0), (1, 1), (1, 1)))
        conv = (pad[:, :, :-2, 1:-1] + pad[:, :, 2:, 1:-1] +
                pad[:, :, 1:-1, :-2] + pad[:, :, 1:-1, 2:]) / 4.0
        yp = np.where(yp == 0, conv, yp)
        out[i] = np.transpose(yp, (0, 2, 3, 1))[0].astype(np.uint8)
    return out


if __name__ == "__main__":
    key = jax.random.PRNGKey(0)
    # Small but TPU-shaped: 3 frames, H=64 (-> two 32-row tiles, exercises the
    # halo path), W_half=128 (lane-dense), C=3 like a BGR video frame.
    n_frames, H, W_half, C = 3, 64, 128, 3
    x = jax.random.randint(key, (n_frames, H, W_half, C), 0, 256).astype(jnp.float32)

    y = upsample_video(x)                     # mirrors the per-frame loop, batched
    y = jax.block_until_ready(y)

    assert y.shape == (n_frames, H, 2 * W_half, C)
    assert y.dtype == jnp.uint8

    ref = _ref_upsample_video(np.asarray(x))
    np.testing.assert_array_equal(np.asarray(y), ref)

    print("KERNEL_OK")
</pallas_src>

<mosaic_0001>
module attributes {stable_mosaic.version = 11 : i64} {
  func.func @_upsample_kernel(%arg0: i32, %arg1: i32, %arg2: memref<1x3x32x128xf32, #tpu.memory_space<vmem>>, %arg3: memref<1x3x8x128xf32, #tpu.memory_space<vmem>>, %arg4: memref<1x3x8x128xf32, #tpu.memory_space<vmem>>, %arg5: memref<1x3x2x32x128xi8, #tpu.memory_space<vmem>>) attributes {dimension_semantics = [#tpu.dimension_semantics<parallel>, #tpu.dimension_semantics<parallel>], iteration_bounds = array<i64: 3, 2>, scalar_prefetch = 0 : i64, scratch_operands = 0 : i64, tpu.core_type = #tpu.core_type<tc>, window_params = [{transform_indices = @transform_0, window_bounds = array<i64: 1, 3, 32, 128>}, {transform_indices = @transform_1, window_bounds = array<i64: 1, 3, 8, 128>}, {transform_indices = @transform_2, window_bounds = array<i64: 1, 3, 8, 128>}, {transform_indices = @transform_3, window_bounds = array<i64: 1, 3, 2, 32, 128>}]} {
    %c0_i32 = arith.constant 0 : i32
    %0 = arith.addi %arg0, %c0_i32 : i32
    %c2_i32 = arith.constant 2 : i32
    %c0_i32_0 = arith.constant 0 : i32
    %1 = arith.cmpi eq, %c2_i32, %c0_i32_0 : i32
    %c1_i32 = arith.constant 1 : i32
    %2 = arith.select %1, %c1_i32, %c2_i32 : i32
    %3 = arith.remsi %0, %2 : i32
    %c0_i32_1 = arith.constant 0 : i32
    %4 = arith.cmpi ne, %3, %c0_i32_1 : i32
    %c0_i32_2 = arith.constant 0 : i32
    %5 = arith.cmpi slt, %3, %c0_i32_2 : i32
    %c0_i32_3 = arith.constant 0 : i32
    %6 = arith.cmpi slt, %2, %c0_i32_3 : i32
    %7 = arith.xori %5, %6 : i1
    %8 = arith.andi %7, %4 : i1
    %9 = arith.addi %3, %2 : i32
    %10 = arith.select %8, %9, %3 : i32
    %c0 = arith.constant 0 : index
    %c0_4 = arith.constant 0 : index
    %c0_5 = arith.constant 0 : index
    %c0_6 = arith.constant 0 : index
    %11 = vector.load %arg2[%c0, %c0_4, %c0_5, %c0_6] : memref<1x3x32x128xf32, #tpu.memory_space<vmem>>, vector<1x3x32x128xf32>
    %12 = vector.shape_cast %11 : vector<1x3x32x128xf32> to vector<3x32x128xf32>
    %c0_7 = arith.constant 0 : index
    %c0_8 = arith.constant 0 : index
    %c7 = arith.constant 7 : index
    %c0_9 = arith.constant 0 : index
    %13 = vector.load %arg3[%c0_7, %c0_8, %c7, %c0_9] : memref<1x3x8x128xf32, #tpu.memory_space<vmem>>, vector<1x3x1x128xf32>
    %14 = vector.shape_cast %13 : vector<1x3x1x128xf32> to vector<3x1x128xf32>
    %c0_i32_10 = arith.constant 0 : i32
    %15 = arith.cmpi sgt, %arg1, %c0_i32_10 : i32
    %16 = arith.extui %15 : i1 to i32
    %17 = arith.sitofp %16 : i32 to f32
    %18 = vector.broadcast %17 : f32 to vector<3x1x128xf32>
    %19 = arith.mulf %14, %18 : vector<3x1x128xf32>
    %c0_11 = arith.constant 0 : index
    %c0_12 = arith.constant 0 : index
    %c0_13 = arith.constant 0 : index
    %c0_14 = arith.constant 0 : index
    %20 = vector.load %arg4[%c0_11, %c0_12, %c0_13, %c0_14] : memref<1x3x8x128xf32, #tpu.memory_space<vmem>>, vector<1x3x1x128xf32>
    %21 = vector.shape_cast %20 : vector<1x3x1x128xf32> to vector<3x1x128xf32>
    %c1_i32_15 = arith.constant 1 : i32
    %22 = arith.cmpi slt, %arg1, %c1_i32_15 : i32
    %23 = arith.extui %22 : i1 to i32
    %24 = arith.sitofp %23 : i32 to f32
    %25 = vector.broadcast %24 : f32 to vector<3x1x128xf32>
    %26 = arith.mulf %21, %25 : vector<3x1x128xf32>
    %27 = vector.extract_strided_slice %12 {offsets = [0, 0, 0], sizes = [3, 31, 128], strides = [1, 1, 1]} : vector<3x32x128xf32> to vector<3x31x128xf32>
    %28 = tpu.concatenate %19, %27 in 1 : vector<3x1x128xf32>, vector<3x31x128xf32> -> vector<3x32x128xf32>
    %29 = vector.extract_strided_slice %12 {offsets = [0, 1, 0], sizes = [3, 31, 128], strides = [1, 1, 1]} : vector<3x32x128xf32> to vector<3x31x128xf32>
    %30 = tpu.concatenate %29, %26 in 1 : vector<3x31x128xf32>, vector<3x1x128xf32> -> vector<3x32x128xf32>
    %31 = arith.addf %28, %30 : vector<3x32x128xf32>
    %cst = arith.constant 0.000000e+00 : f32
    %32 = vector.broadcast %cst : f32 to vector<3x32x1xf32>
    %33 = vector.extract_strided_slice %12 {offsets = [0, 0, 0], sizes = [3, 32, 127], strides = [1, 1, 1]} : vector<3x32x128xf32> to vector<3x32x127xf32>
    %34 = tpu.concatenate %32, %33 in 2 : vector<3x32x1xf32>, vector<3x32x127xf32> -> vector<3x32x128xf32>
    %35 = vector.extract_strided_slice %12 {offsets = [0, 0, 1], sizes = [3, 32, 127], strides = [1, 1, 1]} : vector<3x32x128xf32> to vector<3x32x127xf32>
    %36 = tpu.concatenate %35, %32 in 2 : vector<3x32x127xf32>, vector<3x32x1xf32> -> vector<3x32x128xf32>
    %37 = arith.addf %31, %34 : vector<3x32x128xf32>
    %38 = arith.addf %37, %12 : vector<3x32x128xf32>
    %cst_16 = arith.constant 2.500000e-01 : f32
    %39 = vector.broadcast %cst_16 : f32 to vector<3x32x128xf32>
    %40 = arith.mulf %38, %39 : vector<3x32x128xf32>
    %41 = arith.addf %31, %12 : vector<3x32x128xf32>
    %42 = arith.addf %41, %36 : vector<3x32x128xf32>
    %cst_17 = arith.constant 2.500000e-01 : f32
    %43 = vector.broadcast %cst_17 : f32 to vector<3x32x128xf32>
    %44 = arith.mulf %42, %43 : vector<3x32x128xf32>
    %45 = tpu.iota {dimensions = array<i32: 1>} : vector<3x32x128xi32>
    %46 = vector.broadcast %10 : i32 to vector<3x32x128xi32>
    %47 = arith.addi %45, %46 : vector<3x32x128xi32>
    %c2_i32_18 = arith.constant 2 : i32
    %c0_i32_19 = arith.constant 0 : i32
    %48 = arith.cmpi eq, %c2_i32_18, %c0_i32_19 : i32
    %c1_i32_20 = arith.constant 1 : i32
    %49 = arith.select %48, %c1_i32_20, %c2_i32_18 : i32
    %50 = vector.broadcast %49 : i32 to vector<3x32x128xi32>
    %51 = arith.remsi %47, %50 : vector<3x32x128xi32>
    %c0_i32_21 = arith.constant 0 : i32
    %52 = vector.broadcast %c0_i32_21 : i32 to vector<3x32x128xi32>
    %53 = arith.cmpi ne, %51, %52 : vector<3x32x128xi32>
    %c0_i32_22 = arith.constant 0 : i32
    %54 = vector.broadcast %c0_i32_22 : i32 to vector<3x32x128xi32>
    %55 = arith.cmpi slt, %51, %54 : vector<3x32x128xi32>
    %c0_i32_23 = arith.constant 0 : i32
    %56 = arith.cmpi slt, %49, %c0_i32_23 : i32
    %57 = vector.broadcast %56 : i1 to vector<3x32x128xi1>
    %58 = vector.broadcast %57 : vector<3x32x128xi1> to vector<3x32x128xi1>
    %59 = arith.xori %55, %58 : vector<3x32x128xi1>
    %60 = arith.andi %59, %53 : vector<3x32x128xi1>
    %61 = vector.broadcast %49 : i32 to vector<3x32x128xi32>
    %62 = arith.addi %51, %61 : vector<3x32x128xi32>
    %63 = arith.select %60, %62, %51 : vector<3x32x128xi1>, vector<3x32x128xi32>
    %c1_i32_24 = arith.constant 1 : i32
    %64 = vector.broadcast %c1_i32_24 : i32 to vector<3x32x128xi32>
    %65 = arith.cmpi eq, %63, %64 : vector<3x32x128xi32>
    %66 = arith.select %65, %12, %40 : vector<3x32x128xi1>, vector<3x32x128xf32>
    %67 = arith.select %65, %44, %12 : vector<3x32x128xi1>, vector<3x32x128xf32>
    %68 = arith.fptosi %66 : vector<3x32x128xf32> to vector<3x32x128xi32>
    %69 = arith.trunci %68 : vector<3x32x128xi32> to vector<3x32x128xi8>
    %c0_25 = arith.constant 0 : index
    %c0_26 = arith.constant 0 : index
    %c0_27 = arith.constant 0 : index
    %c0_28 = arith.constant 0 : index
    %c0_29 = arith.constant 0 : index
    %70 = vector.load %arg5[%c0_25, %c0_26, %c0_27, %c0_28, %c0_29] : memref<1x3x2x32x128xi8, #tpu.memory_space<vmem>>, vector<1x3x1x32x128xi8>
    %71 = vector.shape_cast %70 : vector<1x3x1x32x128xi8> to vector<3x32x128xi8>
    %72 = vector.shape_cast %69 : vector<3x32x128xi8> to vector<1x3x1x32x128xi8>
    tpu.vector_store %arg5[%c0_25, %c0_26, %c0_27, %c0_28, %c0_29], %72 {strides = array<i32>} : memref<1x3x2x32x128xi8, #tpu.memory_space<vmem>>, vector<1x3x1x32x128xi8>,
    %73 = arith.fptosi %67 : vector<3x32x128xf32> to vector<3x32x128xi32>
    %74 = arith.trunci %73 : vector<3x32x128xi32> to vector<3x32x128xi8>
    %c0_30 = arith.constant 0 : index
    %c0_31 = arith.constant 0 : index
    %c1 = arith.constant 1 : index
    %c0_32 = arith.constant 0 : index
    %c0_33 = arith.constant 0 : index
    %75 = vector.load %arg5[%c0_30, %c0_31, %c1, %c0_32, %c0_33] : memref<1x3x2x32x128xi8, #tpu.memory_space<vmem>>, vector<1x3x1x32x128xi8>
    %76 = vector.shape_cast %75 : vector<1x3x1x32x128xi8> to vector<3x32x128xi8>
    %77 = vector.shape_cast %74 : vector<3x32x128xi8> to vector<1x3x1x32x128xi8>
    tpu.vector_store %arg5[%c0_30, %c0_31, %c1, %c0_32, %c0_33], %77 {strides = array<i32>} : memref<1x3x2x32x128xi8, #tpu.memory_space<vmem>>, vector<1x3x1x32x128xi8>,
    return
  }
  func.func @transform_0(%arg0: i32, %arg1: i32) -> (i32, i32, i32, i32) {
    %c0_i32 = arith.constant 0 : i32
    %c0_i32_0 = arith.constant 0 : i32
    %c0_i32_1 = arith.constant 0 : i32
    return %arg0, %c0_i32, %arg1, %c0_i32_0 : i32, i32, i32, i32
  }
  func.func @transform_1(%arg0: i32, %arg1: i32) -> (i32, i32, i32, i32) {
    %c4_i32 = arith.constant 4 : i32
    %0 = arith.muli %arg1, %c4_i32 : i32
    %c1_i32 = arith.constant 1 : i32
    %1 = arith.subi %0, %c1_i32 : i32
    %c0_i32 = arith.constant 0 : i32
    %2 = arith.maxsi %1, %c0_i32 : i32
    %c0_i32_0 = arith.constant 0 : i32
    %c0_i32_1 = arith.constant 0 : i32
    %c0_i32_2 = arith.constant 0 : i32
    return %arg0, %c0_i32_0, %2, %c0_i32_1 : i32, i32, i32, i32
  }
  func.func @transform_2(%arg0: i32, %arg1: i32) -> (i32, i32, i32, i32) {
    %c1_i32 = arith.constant 1 : i32
    %0 = arith.addi %arg1, %c1_i32 : i32
    %c4_i32 = arith.constant 4 : i32
    %1 = arith.muli %0, %c4_i32 : i32
    %c7_i32 = arith.constant 7 : i32
    %2 = arith.minsi %1, %c7_i32 : i32
    %c0_i32 = arith.constant 0 : i32
    %c0_i32_0 = arith.constant 0 : i32
    %c0_i32_1 = arith.constant 0 : i32
    return %arg0, %c0_i32, %2, %c0_i32_0 : i32, i32, i32, i32
  }
  func.func @transform_3(%arg0: i32, %arg1: i32) -> (i32, i32, i32, i32, i32) {
    %c0_i32 = arith.constant 0 : i32
    %c0_i32_0 = arith.constant 0 : i32
    %c0_i32_1 = arith.constant 0 : i32
    %c0_i32_2 = arith.constant 0 : i32
    return %arg0, %c0_i32, %c0_i32_0, %arg1, %c0_i32_1 : i32, i32, i32, i32, i32
  }
}

</mosaic_0001>

<llo_original>
// kernel: upsample_video.1
$region0: #{upsample_video.1}
  #allocation0 [shape = 'u32[]', space=smem, size = 0x4, offset = 0x4, fixed_abs, tag = 'smem constant byte address 0x4 - core index']
  #allocation1 [shape = 'u32[144,128]{1,0:T(1,128)}', space=vmem, size = 0x12000, scoped, tag = 'internal scratch']
  #allocation8 [shape = 's32[]', space=sflag, size = 0x4, offset = 0, fixed_abs, tag = 'sflag constant byte address 0x0 - dummy sync flag']
  %s0 = inlined_call_operand.hbm [shape: f32[3,3,64,128], index: 0, kind: input, shape index: {}, may-alias: {0,1,2}]
  %s1 = inlined_call_operand.hbm [shape: f32[3,3,64,128], index: 1, kind: input, shape index: {}, may-alias: {0,1,2}]
  %s2 = inlined_call_operand.hbm [shape: f32[3,3,64,128], index: 2, kind: input, shape index: {}, may-alias: {0,1,2}]
  %s3 = inlined_call_operand.vmem [shape: u8[3,3,2,64,128], index: 3, kind: output, shape index: {}]
  %s4 = sld [smem:[#allocation0]]
  $region94: #{upsample_video.1} parent=0
    _
  %s6 = ssub.s32 1, %s4
  %s7 = scalar_select 0, %s6, %s4
  $region1: #{upsample_video.1} parent=0
    #allocation2 [shape = 'u8[98304]{0}', space=vmem, size = 0x18000, scoped, tag = 'input window, operand 0']
    #allocation3 [shape = 's32[2]{0}', space=sflag, size = 0x8, scoped, tag = 'scoped memory for upsample_video.1']
    #allocation4 [shape = 'u8[24576]{0}', space=vmem, size = 0x6000, scoped, tag = 'input window, operand 1']
    #allocation5 [shape = 's32[2]{0}', space=sflag, size = 0x8, scoped, tag = 'scoped memory for upsample_video.1']
    #allocation6 [shape = 'u8[24576]{0}', space=vmem, size = 0x6000, scoped, tag = 'input window, operand 2']
    #allocation7 [shape = 'u8[49152]{0}', space=vmem, size = 0xc000, scoped, tag = 'output window, operand 0']
    %8 = vsyncpa [#allocation3], 0
    %s9 = scalar_lea.sflag [#allocation3], 1
    %10 = vsyncpa %s9, 0
    %11 = vsyncpa [#allocation5], 0
    %s12 = scalar_lea.sflag [#allocation5], 1
    %13 = vsyncpa %s12, 0
    loop: start=0, step=1, limit=8
    $region2: #{upsample_video.1} parent=1 // loop_pre_header
      _
    $region3: #{upsample_video.1} parent=1 // loop_header
      %s15 = sphi 0, %s19
      %p16 = scmp.ge.s32.totalorder %s15, 8
      %s22 = sphi 0, %s34
      %s23 = sphi 0, %s30
      %s24 = sphi 0, %s22
      %s25 = sphi 0, %s23
      %s26 = sphi 0, %s24
      %s27 = sphi 0, %s25
      %s39 = sphi 0, %s41
      %s42 = sphi 0, %s39
      %s43 = sphi 0, %s42
      %s59 = sphi 0, %s43
      %s75 = sphi 0, %s77
      %s78 = sphi 0, %s75
      %s79 = sphi 0, %s78
      %s95 = sphi 0, %s79
      %s111 = sphi 0, %s113
      %s114 = sphi 0, %s111
      %s115 = sphi 0, %s114
      %s131 = sphi 0, %s115
      %s139 = sphi 0, %s141
      %s142 = sphi 0, %s139
      %s143 = sphi 0, %s142
      %s159 = sphi 0, %s143
    $region4: #{upsample_video.1} parent=1 // loop_header_branch
      %18 = sbr.rel (%p16) target = $region8
    $region5: #{upsample_video.1} parent=1 // loop_body
      %s20 = ssub.s32 %s15, 1
      %s21 = ssub.s32 %s15, 2
      %s28 = sadd.s32 1, %s23
      %p29 = scmp.ge.s32.totalorder %s28, 2
      %s30 = scalar_select %p29, 0, %s28
      %s31 = sadd.s32 1, %s22
      %s32 = scalar_select %p29, %s31, %s22
      %p33 = scmp.ge.s32.totalorder %s32, 3
      %s34 = scalar_select %p33, 0, %s32
      %s35 = ssub.s32 %s22, %s34
      %s36 = ssub.s32 %s23, %s30
      %s37 = sor.u32 %s35, %s36
      %p38 = scmp.eq.s32.totalorder %s37, 0
      %s40 = sadd.s32 %s39, 1
      %s41 = scalar_select %p38, %s39, %s40
      %p44 = pneg %p38
      %p45 = scmp.eq.s32.totalorder %s15, 5
      %p46 = por %p44, %p45
      %p47 = scmp.ne.s32.totalorder %s39, %s42
      %p48 = scmp.eq.s32.totalorder %s15, 0
      %p49 = por %p47, %p48
      %p50 = scmp.ne.s32.totalorder %s39, %s42
      %p51 = scmp.eq.s32.totalorder %s20, 5
      %p52 = por %p50, %p51
      %p53 = scmp.ne.s32.totalorder %s42, %s43
      %p54 = scmp.eq.s32.totalorder %s20, 0
      %p55 = por %p53, %p54
      %p56 = scmp.ne.s32.totalorder %s42, %s43
      %p57 = scmp.eq.s32.totalorder %s21, 5
      %p58 = por %p56, %p57
      %p60 = scmp.ne.s32.totalorder %s43, %s59
      %p61 = scmp.eq.s32.totalorder %s21, 0
      %p62 = por %p60, %p61
      %s63 = smul.u32 %s23, 4
      %s64 = ssub.s32 %s63, 1
      %p65 = scmp.gt.s32.totalorder %s64, 0
      %s66 = scalar_select %p65, %s64, 0
      %s67 = smul.u32 %s30, 4
      %s68 = ssub.s32 %s67, 1
      %p69 = scmp.gt.s32.totalorder %s68, 0
      %s70 = scalar_select %p69, %s68, 0
      %s71 = ssub.s32 %s22, %s34
      %s72 = ssub.s32 %s66, %s70
      %s73 = sor.u32 %s71, %s72
      %p74 = scmp.eq.s32.totalorder %s73, 0
      %s76 = sadd.s32 %s75, 1
      %s77 = scalar_select %p74, %s75, %s76
      %p80 = pneg %p74
      %p81 = scmp.eq.s32.totalorder %s15, 5
      %p82 = por %p80, %p81
      %p83 = scmp.ne.s32.totalorder %s75, %s78
      %p84 = scmp.eq.s32.totalorder %s15, 0
      %p85 = por %p83, %p84
      %p86 = scmp.ne.s32.totalorder %s75, %s78
      %p87 = scmp.eq.s32.totalorder %s20, 5
      %p88 = por %p86, %p87
      %p89 = scmp.ne.s32.totalorder %s78, %s79
      %p90 = scmp.eq.s32.totalorder %s20, 0
      %p91 = por %p89, %p90
      %p92 = scmp.ne.s32.totalorder %s78, %s79
      %p93 = scmp.eq.s32.totalorder %s21, 5
      %p94 = por %p92, %p93
      %p96 = scmp.ne.s32.totalorder %s79, %s95
      %p97 = scmp.eq.s32.totalorder %s21, 0
      %p98 = por %p96, %p97
      %s99 = sadd.s32 %s23, 1
      %s100 = smul.u32 %s99, 4
      %p101 = scmp.lt.s32.totalorder %s100, 7
      %s102 = scalar_select %p101, %s100, 7
      %s103 = sadd.s32 %s30, 1
      %s104 = smul.u32 %s103, 4
      %p105 = scmp.lt.s32.totalorder %s104, 7
      %s106 = scalar_select %p105, %s104, 7
      %s107 = ssub.s32 %s22, %s34
      %s108 = ssub.s32 %s102, %s106
      %s109 = sor.u32 %s107, %s108
      %p110 = scmp.eq.s32.totalorder %s109, 0
      %s112 = sadd.s32 %s111, 1
      %s113 = scalar_select %p110, %s111, %s112
      %p116 = pneg %p110
      %p117 = scmp.eq.s32.totalorder %s15, 5
      %p118 = por %p116, %p117
      %p119 = scmp.ne.s32.totalorder %s111, %s114
      %p120 = scmp.eq.s32.totalorder %s15, 0
      %p121 = por %p119, %p120
      %p122 = scmp.ne.s32.totalorder %s111, %s114
      %p123 = scmp.eq.s32.totalorder %s20, 5
      %p124 = por %p122, %p123
      %p125 = scmp.ne.s32.totalorder %s114, %s115
      %p126 = scmp.eq.s32.totalorder %s20, 0
      %p127 = por %p125, %p126
      %p128 = scmp.ne.s32.totalorder %s114, %s115
      %p129 = scmp.eq.s32.totalorder %s21, 5
      %p130 = por %p128, %p129
      %p132 = scmp.ne.s32.totalorder %s115, %s131
      %p133 = scmp.eq.s32.totalorder %s21, 0
      %p134 = por %p132, %p133
      %s135 = ssub.s32 %s22, %s34
      %s136 = ssub.s32 %s23, %s30
      %s137 = sor.u32 %s135, %s136
      %p138 = scmp.eq.s32.totalorder %s137, 0
      %s140 = sadd.s32 %s139, 1
      %s141 = scalar_select %p138, %s139, %s140
      %p144 = pneg %p138
      %p145 = scmp.eq.s32.totalorder %s15, 5
      %p146 = por %p144, %p145
      %p147 = scmp.ne.s32.totalorder %s139, %s142
      %p148 = scmp.eq.s32.totalorder %s15, 0
      %p149 = por %p147, %p148
      %p150 = scmp.ne.s32.totalorder %s139, %s142
      %p151 = scmp.eq.s32.totalorder %s20, 5
      %p152 = por %p150, %p151
      %p153 = scmp.ne.s32.totalorder %s142, %s143
      %p154 = scmp.eq.s32.totalorder %s20, 0
      %p155 = por %p153, %p154
      %p156 = scmp.ne.s32.totalorder %s142, %s143
      %p157 = scmp.eq.s32.totalorder %s21, 5
      %p158 = por %p156, %p157
      %p160 = scmp.ne.s32.totalorder %s143, %s159
      %p161 = scmp.eq.s32.totalorder %s21, 0
      %p162 = por %p160, %p161
      %p163 = scmp.le.s32.totalorder 1, %s15
      %p164 = scmp.lt.s32.totalorder %s15, 7
      %p165 = pnand %p163, %p164
      %p166 = pneg %p165
      // Predicated region
      $region9: #{upsample_video.1} parent=5 // pred_check
        _
      $region10: #{upsample_video.1} parent=5 // pred_check_branch
        %168 = sbr.rel (%p165) target = $region12
      $region11: #{upsample_video.1} parent=5 // pred_region
        %s169 = ssub.s32 %s15, 1
      $region12: #{upsample_video.1} parent=5 // pred_fallthru
        _
      %p170 = scmp.lt.s32.totalorder %s15, 6
      // Predicated region
      $region13: #{upsample_video.1} parent=5 // pred_check
        %p171 = pneg %p170
      $region14: #{upsample_video.1} parent=5 // pred_check_branch
        %173 = sbr.rel (%p171) target = $region16
      $region15: #{upsample_video.1} parent=5 // pred_region
        // Predicated region
        $region17: #{upsample_video.1} parent=15 // pred_check
          %p174 = pneg %p49
        $region18: #{upsample_video.1} parent=15 // pred_check_branch
          %176 = sbr.rel (%p174) target = $region20
        $region19: #{upsample_video.1} parent=15 // pred_region
          #allocation9 [shape = 'u32[6]{0}', space=smem, size = 0x18, scoped, tag = 'DMA stride descriptor']
          %s177 = sand.u32 %s39, 1
          %s178 = scalar_lea.sflag [#allocation3], %s177
          %s179 = sand.u32 %s39, 1
          %s180 = smul.addr %s179, 96
          %s181 = scalar_lea.vmem [#allocation2], %s180
          %s182 = smul.u32 4, %s23
          %s184 = ssub.s32 1536, 1536
          %185 = vsyncadd %s178, %s184
          %s186 = smul.addr %s22, 24
          %s187 = sadd.s32 %s182, %s186
          %s188 = smul.addr %s187, 128
          %s189 = scalar_lea.hbm %s0, %s188
          %s191 = sshll.u32 1, 14
          %s192 = sxor.u32 4294967295, %s191
          %s194 = sld [smem:[#allocation0]]
          %s195 = sadd.s32 2, %s194
          %s197 = sshll.u32 7, 26
          %s198 = sxor.u32 4294967295, %s197
          %s199 = sand.u32 0, %s198
          %s200 = sshll.u32 %s195, 26
          %s201 = sor.u32 %s199, %s200
          %s202 = sshll.u32 %s181, 4
          %s203 = int_to_ptr.vmem [resolvable:$true] %s202
          %209 = sst [smem:[#allocation9]] 1024
          %s210 = scalar_lea.smem [#allocation9], 1
          %211 = sst [smem:[%s210]] 512
          %s212 = scalar_lea.smem [#allocation9], 2
          %213 = sst [smem:[%s212]] 4
          %s214 = scalar_lea.smem [#allocation9], 3
          %215 = sst [smem:[%s214]] 128
          %s216 = scalar_lea.smem [#allocation9], 4
          %217 = sst [smem:[%s216]] 128
          %s218 = scalar_lea.smem [#allocation9], 5
          %219 = sst [smem:[%s218]] 8
          %221 = dma.general %s189, 1536, %s203, %s178, 131072, [#allocation9], %s201, 0
        $region20: #{upsample_video.1} parent=15 // pred_fallthru
          _
        // Predicated region
        $region21: #{upsample_video.1} parent=15 // pred_check
          %p222 = pneg %p85
        $region22: #{upsample_video.1} parent=15 // pred_check_branch
          %224 = sbr.rel (%p222) target = $region24
        $region23: #{upsample_video.1} parent=15 // pred_region
          %s225 = sand.u32 %s15, 1
          %s226 = scalar_lea.sflag [#allocation5], %s225
          %s227 = sand.u32 %s75, 1
          %s228 = smul.addr %s227, 24
          %s229 = scalar_lea.vmem [#allocation4], %s228
          %s230 = smul.u32 %s23, 4
          %s231 = ssub.s32 %s230, 1
          %p232 = scmp.gt.s32.totalorder %s231, 0
          %s233 = scalar_select %p232, %s231, 0
          %s235 = ssub.s32 384, 384
          %236 = vsyncadd %s226, %s235
          %s237 = smul.addr %s22, 24
          %s238 = sadd.s32 %s233, %s237
          %s239 = smul.addr %s238, 128
          %s240 = scalar_lea.hbm %s1, %s239
          %s241 = sshll.u32 %s229, 4
          %s242 = int_to_ptr.vmem [resolvable:$true] %s241
          %247 = dma.hbm_to_vmem [thread:$0]  %s240, 384, %s242, %s226, 1024, 128, 8
        $region24: #{upsample_video.1} parent=15 // pred_fallthru
          _
        // Predicated region
        $region25: #{upsample_video.1} parent=15 // pred_check
          %p248 = pneg %p121
        $region26: #{upsample_video.1} parent=15 // pred_check_branch
          %250 = sbr.rel (%p248) target = $region28
        $region27: #{upsample_video.1} parent=15 // pred_region
          %s251 = sand.u32 %s15, 1
          %s252 = scalar_lea.sflag [#allocation5], %s251
          %s253 = sand.u32 %s111, 1
          %s254 = smul.addr %s253, 24
          %s255 = scalar_lea.vmem [#allocation6], %s254
          %s256 = sadd.s32 %s23, 1
          %s257 = smul.u32 %s256, 4
          %p258 = scmp.lt.s32.totalorder %s257, 7
          %s259 = scalar_select %p258, %s257, 7
          %s261 = ssub.s32 384, 384
          %262 = vsyncadd %s252, %s261
          %s263 = smul.addr %s22, 24
          %s264 = sadd.s32 %s259, %s263
          %s265 = smul.addr %s264, 128
          %s266 = scalar_lea.hbm %s2, %s265
          %s267 = sshll.u32 %s255, 4
          %s268 = int_to_ptr.vmem [resolvable:$true] %s267
          %273 = dma.hbm_to_vmem [thread:$0]  %s266, 384, %s268, %s252, 1024, 128, 8
        $region28: #{upsample_video.1} parent=15 // pred_fallthru
          _
      $region16: #{upsample_video.1} parent=5 // pred_fallthru
        _
      %p274 = scmp.le.s32.totalorder 1, %s15
      %p275 = scmp.lt.s32.totalorder %s15, 7
      %p276 = pnand %p274, %p275
      %p277 = pneg %p276
      // Predicated region
      $region29: #{upsample_video.1} parent=5 // pred_check
        _
      $region30: #{upsample_video.1} parent=5 // pred_check_branch
        %279 = sbr.rel (%p276) target = $region32
      $region31: #{upsample_video.1} parent=5 // pred_region
        %s280 = ssub.s32 %s15, 1
        %s281 = sand.u32 %s42, 1
        %s282 = scalar_lea.sflag [#allocation3], %s281
        %s283 = sand.u32 %s42, 1
        %s284 = smul.addr %s283, 96
        %s285 = scalar_lea.vmem [#allocation2], %s284
        // Predicated region
        $region33: #{upsample_video.1} parent=31 // pred_check
          %p286 = pneg %p55
        $region34: #{upsample_video.1} parent=31 // pred_check_branch
          %288 = sbr.rel (%p286) target = $region36
        $region35: #{upsample_video.1} parent=31 // pred_region
          %289 = dma.done %s282, 1536
        $region36: #{upsample_video.1} parent=31 // pred_fallthru
          _
        %s290 = sand.u32 %s20, 1
        %s291 = scalar_lea.sflag [#allocation5], %s290
        %s292 = sand.u32 %s78, 1
        %s293 = smul.addr %s292, 24
        %s294 = scalar_lea.vmem [#allocation4], %s293
        // Predicated region
        $region37: #{upsample_video.1} parent=31 // pred_check
          %p295 = pneg %p91
        $region38: #{upsample_video.1} parent=31 // pred_check_branch
          %297 = sbr.rel (%p295) target = $region40
        $region39: #{upsample_video.1} parent=31 // pred_region
          %298 = dma.done %s291, 384
        $region40: #{upsample_video.1} parent=31 // pred_fallthru
          _
        %s299 = sand.u32 %s20, 1
        %s300 = scalar_lea.sflag [#allocation5], %s299
        %s301 = sand.u32 %s114, 1
        %s302 = smul.addr %s301, 24
        %s303 = scalar_lea.vmem [#allocation6], %s302
        // Predicated region
        $region41: #{upsample_video.1} parent=31 // pred_check
          %p304 = pneg %p127
        $region42: #{upsample_video.1} parent=31 // pred_check_branch
          %306 = sbr.rel (%p304) target = $region44
        $region43: #{upsample_video.1} parent=31 // pred_region
          %307 = dma.done %s300, 384
        $region44: #{upsample_video.1} parent=31 // pred_fallthru
          _
        %s308 = sand.u32 %s42, 1
        %s309 = scalar_lea.sflag [#allocation3], %s308
        %s310 = sand.u32 %s42, 1
        %s311 = smul.addr %s310, 96
        %s312 = scalar_lea.vmem [#allocation2], %s311
        %p313 = pneg %p55
        %p314 = pneg %p52
        %s315 = sand.u32 %s20, 1
        %s316 = scalar_lea.sflag [#allocation5], %s315
        %s317 = sand.u32 %s78, 1
        %s318 = smul.addr %s317, 24
        %s319 = scalar_lea.vmem [#allocation4], %s318
        %p320 = pneg %p91
        %p321 = pneg %p88
        %s322 = sand.u32 %s20, 1
        %s323 = scalar_lea.sflag [#allocation5], %s322
        %s324 = sand.u32 %s114, 1
        %s325 = smul.addr %s324, 24
        %s326 = scalar_lea.vmem [#allocation6], %s325
        %p327 = pneg %p127
        %p328 = pneg %p124
        %p329 = pneg %p155
        %p330 = pneg %p152
        %s331 = sand.u32 %s142, 1
        %s332 = sand.u32 %s142, 1
        %s333 = smul.addr %s332, 48
        %s334 = scalar_lea.vmem [#allocation7], %s333
        %s335 = smul.u32 4, %s25
        %s336 = smul.u32 %s25, 4
        %s337 = ssub.s32 %s336, 1
        %p338 = scmp.gt.s32.totalorder %s337, 0
        %s339 = scalar_select %p338, %s337, 0
        %s340 = sadd.s32 %s25, 1
        %s341 = smul.u32 %s340, 4
        %p342 = scmp.lt.s32.totalorder %s341, 7
        %s343 = scalar_select %p342, %s341, 7
        %s344 = smul.u32 4, %s25
        %p345 = scmp.lt.s32.totalorder %s24, 0
        %s346 = ssub.s32 0, %s24
        %s347 = scalar_select %p345, %s346, %s24
        %s348 = sand.u32 %s347, 1
        %s349 = ssub.s32 0, %s348
        %s350 = scalar_select %p345, %s349, %s348
        %p351 = scmp.ne.s32.totalorder %s350, 0
        %p352 = scmp.lt.s32.totalorder %s350, 0
        %p353 = pnand %p352, %p351
        %p354 = pneg %p353
        %s355 = sadd.s32 %s350, 2
        %s356 = scalar_select %p354, %s355, %s350
        %v357 = vld [vmem:[%s285] sm:$0xff]
        %v358 = vld [vmem:[%s285 + $0x8] sm:$0xff]
        %v359 = vld [vmem:[%s285 + $0x10] sm:$0xff]
        %v360 = vld [vmem:[%s285 + $0x18] sm:$0xff]
        %v361 = vld [vmem:[%s285 + $0x20] sm:$0xff]
        %v362 = vld [vmem:[%s285 + $0x28] sm:$0xff]
        %v363 = vld [vmem:[%s285 + $0x30] sm:$0xff]
        %v364 = vld [vmem:[%s285 + $0x38] sm:$0xff]
        %v365 = vld [vmem:[%s285 + $0x40] sm:$0xff]
        %v366 = vld [vmem:[%s285 + $0x48] sm:$0xff]
        %v367 = vld [vmem:[%s285 + $0x50] sm:$0xff]
        %v368 = vld [vmem:[%s285 + $0x58] sm:$0xff]
        %v369 = vld [vmem:[%s294 + $0x7] sm:$0x1]
        %v370 = vld [vmem:[%s294 + $0xf] sm:$0x1]
        %v371 = vld [vmem:[%s294 + $0x17] sm:$0x1]
        %p372 = scmp.gt.s32.totalorder %s25, 0
        %s373 = scalar_select %p372, 1, 0
        %s374 = scvt.s32.f32 %s373
        %v375 = vstv %s374
        %v376 = vmul.f32 %v369, %v375
        %v377 = vmul.f32 %v370, %v375
        %v378 = vmul.f32 %v371, %v375
        %v379 = vld [vmem:[%s303] sm:$0x1]
        %v380 = vld [vmem:[%s303 + $0x8] sm:$0x1]
        %v381 = vld [vmem:[%s303 + $0x10] sm:$0x1]
        %p382 = scmp.lt.s32.totalorder %s25, 1
        %s383 = scalar_select %p382, 1, 0
        %s384 = scvt.s32.f32 %s383
        %v385 = vstv %s384
        %v386 = vmul.f32 %v379, %v385
        %v387 = vmul.f32 %v380, %v385
        %v388 = vmul.f32 %v381, %v385
        %vm401 = vcmask 1040384
        %v402 = vrot.slane %v357, 7
        %v403 = vrot.slane %v358, 7
        %v404 = vsel %vm401, %v402, %v403
        %v405 = vrot.slane %v359, 7
        %v406 = vsel %vm401, %v403, %v405
        %v407 = vrot.slane %v360, 7
        %v408 = vsel %vm401, %v405, %v407
        %v409 = vrot.slane %v361, 7
        %v410 = vrot.slane %v362, 7
        %v411 = vsel %vm401, %v409, %v410
        %v412 = vrot.slane %v363, 7
        %v413 = vsel %vm401, %v410, %v412
        %v414 = vrot.slane %v364, 7
        %v415 = vsel %vm401, %v412, %v414
        %v416 = vrot.slane %v365, 7
        %v417 = vrot.slane %v366, 7
        %v418 = vsel %vm401, %v416, %v417
        %v419 = vrot.slane %v367, 7
        %v420 = vsel %vm401, %v417, %v419
        %v421 = vrot.slane %v368, 7
        %v422 = vsel %vm401, %v419, %v421
        %v435 = vsel %vm401, %v376, %v402
        %v436 = vsel %vm401, %v377, %v409
        %v437 = vsel %vm401, %v378, %v416
        %vm438 = vcmask 1046528
        %v439 = vrot.slane %v357, 1
        %v440 = vrot.slane %v358, 1
        %v441 = vsel %vm438, %v439, %v440
        %v442 = vrot.slane %v359, 1
        %v443 = vsel %vm438, %v440, %v442
        %v444 = vrot.slane %v360, 1
        %v445 = vsel %vm438, %v442, %v444
        %v446 = vrot.slane %v361, 1
        %v447 = vrot.slane %v362, 1
        %v448 = vsel %vm438, %v446, %v447
        %v449 = vrot.slane %v363, 1
        %v450 = vsel %vm438, %v447, %v449
        %v451 = vrot.slane %v364, 1
        %v452 = vsel %vm438, %v449, %v451
        %v453 = vrot.slane %v365, 1
        %v454 = vrot.slane %v366, 1
        %v455 = vsel %vm438, %v453, %v454
        %v456 = vrot.slane %v367, 1
        %v457 = vsel %vm438, %v454, %v456
        %v458 = vrot.slane %v368, 1
        %v459 = vsel %vm438, %v456, %v458
        %v475 = vrot.slane %v386, 1
        %v476 = vrot.slane %v387, 1
        %v477 = vrot.slane %v388, 1
        %v481 = vsel %vm438, %v444, %v475
        %v482 = vsel %vm438, %v451, %v476
        %v483 = vsel %vm438, %v458, %v477
        %v484 = vadd.f32 %v435, %v441
        %v485 = vadd.f32 %v404, %v443
        %v486 = vadd.f32 %v406, %v445
        %v487 = vadd.f32 %v408, %v481
        %v488 = vadd.f32 %v436, %v448
        %v489 = vadd.f32 %v411, %v450
        %v490 = vadd.f32 %v413, %v452
        %v491 = vadd.f32 %v415, %v482
        %v492 = vadd.f32 %v437, %v455
        %v493 = vadd.f32 %v418, %v457
        %v494 = vadd.f32 %v420, %v459
        %v495 = vadd.f32 %v422, %v483
        %496 = vrot.lane.b32.xlu0 %v357, 1
        %v497 = vpop.permute.xlu0 %496
        %498 = vrot.lane.b32.xlu0 %v358, 1
        %v499 = vpop.permute.xlu0 %498
        %500 = vrot.lane.b32.xlu0 %v359, 1
        %v501 = vpop.permute.xlu0 %500
        %502 = vrot.lane.b32.xlu0 %v360, 1
        %v503 = vpop.permute.xlu0 %502
        %504 = vrot.lane.b32.xlu0 %v361, 1
        %v505 = vpop.permute.xlu0 %504
        %506 = vrot.lane.b32.xlu0 %v362, 1
        %v507 = vpop.permute.xlu0 %506
        %508 = vrot.lane.b32.xlu0 %v363, 1
        %v509 = vpop.permute.xlu0 %508
        %510 = vrot.lane.b32.xlu0 %v364, 1
        %v511 = vpop.permute.xlu0 %510
        %512 = vrot.lane.b32.xlu0 %v365, 1
        %v513 = vpop.permute.xlu0 %512
        %514 = vrot.lane.b32.xlu0 %v366, 1
        %v515 = vpop.permute.xlu0 %514
        %516 = vrot.lane.b32.xlu0 %v367, 1
        %v517 = vpop.permute.xlu0 %516
        %518 = vrot.lane.b32.xlu0 %v368, 1
        %v519 = vpop.permute.xlu0 %518
        %vm532 = vcmask 7168
        %v533 = vsel %vm532, 0.0, %v497
        %v534 = vsel %vm532, 0.0, %v499
        %v535 = vsel %vm532, 0.0, %v501
        %v536 = vsel %vm532, 0.0, %v503
        %v537 = vsel %vm532, 0.0, %v505
        %v538 = vsel %vm532, 0.0, %v507
        %v539 = vsel %vm532, 0.0, %v509
        %v540 = vsel %vm532, 0.0, %v511
        %v541 = vsel %vm532, 0.0, %v513
        %v542 = vsel %vm532, 0.0, %v515
        %v543 = vsel %vm532, 0.0, %v517
        %v544 = vsel %vm532, 0.0, %v519
        %545 = vrot.lane.b32.xlu0 %v357, 127
        %v546 = vpop.permute.xlu0 %545
        %547 = vrot.lane.b32.xlu0 %v358, 127
        %v548 = vpop.permute.xlu0 %547
        %549 = vrot.lane.b32.xlu0 %v359, 127
        %v550 = vpop.permute.xlu0 %549
        %551 = vrot.lane.b32.xlu0 %v360, 127
        %v552 = vpop.permute.xlu0 %551
        %553 = vrot.lane.b32.xlu0 %v361, 127
        %v554 = vpop.permute.xlu0 %553
        %555 = vrot.lane.b32.xlu0 %v362, 127
        %v556 = vpop.permute.xlu0 %555
        %557 = vrot.lane.b32.xlu0 %v363, 127
        %v558 = vpop.permute.xlu0 %557
        %559 = vrot.lane.b32.xlu0 %v364, 127
        %v560 = vpop.permute.xlu0 %559
        %561 = vrot.lane.b32.xlu0 %v365, 127
        %v562 = vpop.permute.xlu0 %561
        %563 = vrot.lane.b32.xlu0 %v366, 127
        %v564 = vpop.permute.xlu0 %563
        %565 = vrot.lane.b32.xlu0 %v367, 127
        %v566 = vpop.permute.xlu0 %565
        %567 = vrot.lane.b32.xlu0 %v368, 127
        %v568 = vpop.permute.xlu0 %567
        %vm581 = vcmask 1039360
        %v582 = vsel %vm581, %v546, 0.0
        %v583 = vsel %vm581, %v548, 0.0
        %v584 = vsel %vm581, %v550, 0.0
        %v585 = vsel %vm581, %v552, 0.0
        %v586 = vsel %vm581, %v554, 0.0
        %v587 = vsel %vm581, %v556, 0.0
        %v588 = vsel %vm581, %v558, 0.0
        %v589 = vsel %vm581, %v560, 0.0
        %v590 = vsel %vm581, %v562, 0.0
        %v591 = vsel %vm581, %v564, 0.0
        %v592 = vsel %vm581, %v566, 0.0
        %v593 = vsel %vm581, %v568, 0.0
        %v594 = vadd.f32 %v484, %v533
        %v595 = vadd.f32 %v485, %v534
        %v596 = vadd.f32 %v486, %v535
        %v597 = vadd.f32 %v487, %v536
        %v598 = vadd.f32 %v488, %v537
        %v599 = vadd.f32 %v489, %v538
        %v600 = vadd.f32 %v490, %v539
        %v601 = vadd.f32 %v491, %v540
        %v602 = vadd.f32 %v492, %v541
        %v603 = vadd.f32 %v493, %v542
        %v604 = vadd.f32 %v494, %v543
        %v605 = vadd.f32 %v495, %v544
        %v606 = vadd.f32 %v594, %v357
        %v607 = vadd.f32 %v595, %v358
        %v608 = vadd.f32 %v596, %v359
        %v609 = vadd.f32 %v597, %v360
        %v610 = vadd.f32 %v598, %v361
        %v611 = vadd.f32 %v599, %v362
        %v612 = vadd.f32 %v600, %v363
        %v613 = vadd.f32 %v601, %v364
        %v614 = vadd.f32 %v602, %v365
        %v615 = vadd.f32 %v603, %v366
        %v616 = vadd.f32 %v604, %v367
        %v617 = vadd.f32 %v605, %v368
        %v618 = vmul.f32 %v606, 0.25
        %v619 = vmul.f32 %v607, 0.25
        %v620 = vmul.f32 %v608, 0.25
        %v621 = vmul.f32 %v609, 0.25
        %v622 = vmul.f32 %v610, 0.25
        %v623 = vmul.f32 %v611, 0.25
        %v624 = vmul.f32 %v612, 0.25
        %v625 = vmul.f32 %v613, 0.25
        %v626 = vmul.f32 %v614, 0.25
        %v627 = vmul.f32 %v615, 0.25
        %v628 = vmul.f32 %v616, 0.25
        %v629 = vmul.f32 %v617, 0.25
        %v630 = vadd.f32 %v484, %v357
        %v631 = vadd.f32 %v485, %v358
        %v632 = vadd.f32 %v486, %v359
        %v633 = vadd.f32 %v487, %v360
        %v634 = vadd.f32 %v488, %v361
        %v635 = vadd.f32 %v489, %v362
        %v636 = vadd.f32 %v490, %v363
        %v637 = vadd.f32 %v491, %v364
        %v638 = vadd.f32 %v492, %v365
        %v639 = vadd.f32 %v493, %v366
        %v640 = vadd.f32 %v494, %v367
        %v641 = vadd.f32 %v495, %v368
        %v642 = vadd.f32 %v630, %v582
        %v643 = vadd.f32 %v631, %v583
        %v644 = vadd.f32 %v632, %v584
        %v645 = vadd.f32 %v633, %v585
        %v646 = vadd.f32 %v634, %v586
        %v647 = vadd.f32 %v635, %v587
        %v648 = vadd.f32 %v636, %v588
        %v649 = vadd.f32 %v637, %v589
        %v650 = vadd.f32 %v638, %v590
        %v651 = vadd.f32 %v639, %v591
        %v652 = vadd.f32 %v640, %v592
        %v653 = vadd.f32 %v641, %v593
        %v654 = vmul.f32 %v642, 0.25
        %v655 = vmul.f32 %v643, 0.25
        %v656 = vmul.f32 %v644, 0.25
        %v657 = vmul.f32 %v645, 0.25
        %v658 = vmul.f32 %v646, 0.25
        %v659 = vmul.f32 %v647, 0.25
        %v660 = vmul.f32 %v648, 0.25
        %v661 = vmul.f32 %v649, 0.25
        %v662 = vmul.f32 %v650, 0.25
        %v663 = vmul.f32 %v651, 0.25
        %v664 = vmul.f32 %v652, 0.25
        %v665 = vmul.f32 %v653, 0.25
        %v666 = vlaneseq
        %v667 = vshrl.u32 %v666, 7
        %v668 = vadd.s32 %v667, 8
        %v669 = vadd.s32 %v667, 16
        %v670 = vadd.s32 %v667, 24
        %v671 = vstv %s356
        %v672 = vadd.s32 %v667, %v671
        %v673 = vadd.s32 %v668, %v671
        %v674 = vadd.s32 %v669, %v671
        %v675 = vadd.s32 %v670, %v671
        %vm676 = vcmp.lt.s32.totalorder %v672, 0
        %v677 = vsub.s32 0, %v672
        %v678 = vsel %vm676, %v677, %v672
        %v679 = vshrl.u32 %v678, 1
        %v680 = vand.u32 %v678, 1
        %v681 = vsub.s32 0, %v680
        %v682 = vsel %vm676, %v681, %v680
        %vm683 = vcmp.lt.s32.totalorder %v673, 0
        %v684 = vsub.s32 0, %v673
        %v685 = vsel %vm683, %v684, %v673
        %v686 = vshrl.u32 %v685, 1
        %v687 = vand.u32 %v685, 1
        %v688 = vsub.s32 0, %v687
        %v689 = vsel %vm683, %v688, %v687
        %vm690 = vcmp.lt.s32.totalorder %v674, 0
        %v691 = vsub.s32 0, %v674
        %v692 = vsel %vm690, %v691, %v674
        %v693 = vshrl.u32 %v692, 1
        %v694 = vand.u32 %v692, 1
        %v695 = vsub.s32 0, %v694
        %v696 = vsel %vm690, %v695, %v694
        %vm697 = vcmp.lt.s32.totalorder %v675, 0
        %v698 = vsub.s32 0, %v675
        %v699 = vsel %vm697, %v698, %v675
        %v700 = vshrl.u32 %v699, 1
        %v701 = vand.u32 %v699, 1
        %v702 = vsub.s32 0, %v701
        %v703 = vsel %vm697, %v702, %v701
        %vm704 = vcmp.ne.s32.totalorder %v682, 0
        %vm705 = vcmp.ne.s32.totalorder %v689, 0
        %vm706 = vcmp.ne.s32.totalorder %v696, 0
        %vm707 = vcmp.ne.s32.totalorder %v703, 0
        %vm708 = vcmp.lt.s32.totalorder %v682, 0
        %vm709 = vcmp.lt.s32.totalorder %v689, 0
        %vm710 = vcmp.lt.s32.totalorder %v696, 0
        %vm711 = vcmp.lt.s32.totalorder %v703, 0
        %vm712 = vmand %vm708, %vm704
        %vm713 = vmand %vm709, %vm705
        %vm714 = vmand %vm710, %vm706
        %vm715 = vmand %vm711, %vm707
        %v716 = vadd.s32 %v682, 2
        %v717 = vadd.s32 %v689, 2
        %v718 = vadd.s32 %v696, 2
        %v719 = vadd.s32 %v703, 2
        %v720 = vsel %vm712, %v716, %v682
        %v721 = vsel %vm713, %v717, %v689
        %v722 = vsel %vm714, %v718, %v696
        %v723 = vsel %vm715, %v719, %v703
        %vm724 = vcmp.eq.s32.totalorder %v720, 1
        %vm725 = vcmp.eq.s32.totalorder %v721, 1
        %vm726 = vcmp.eq.s32.totalorder %v722, 1
        %vm727 = vcmp.eq.s32.totalorder %v723, 1
        %v728 = vsel %vm724, %v357, %v618
        %v729 = vsel %vm725, %v358, %v619
        %v730 = vsel %vm726, %v359, %v620
        %v731 = vsel %vm727, %v360, %v621
        %v732 = vsel %vm724, %v361, %v622
        %v733 = vsel %vm725, %v362, %v623
        %v734 = vsel %vm726, %v363, %v624
        %v735 = vsel %vm727, %v364, %v625
        %v736 = vsel %vm724, %v365, %v626
        %v737 = vsel %vm725, %v366, %v627
        %v738 = vsel %vm726, %v367, %v628
        %v739 = vsel %vm727, %v368, %v629
        %v740 = vsel %vm724, %v654, %v357
        %v741 = vsel %vm725, %v655, %v358
        %v742 = vsel %vm726, %v656, %v359
        %v743 = vsel %vm727, %v657, %v360
        %v744 = vsel %vm724, %v658, %v361
        %v745 = vsel %vm725, %v659, %v362
        %v746 = vsel %vm726, %v660, %v363
        %v747 = vsel %vm727, %v661, %v364
        %v748 = vsel %vm724, %v662, %v365
        %v749 = vsel %vm725, %v663, %v366
        %v750 = vsel %vm726, %v664, %v367
        %v751 = vsel %vm727, %v665, %v368
        %v752 = vcvt.f32.s32.to.zero.pseudo %v728
        %v753 = vcvt.f32.s32.to.zero.pseudo %v729
        %v754 = vcvt.f32.s32.to.zero.pseudo %v730
        %v755 = vcvt.f32.s32.to.zero.pseudo %v731
        %v756 = vcvt.f32.s32.to.zero.pseudo %v732
        %v757 = vcvt.f32.s32.to.zero.pseudo %v733
        %v758 = vcvt.f32.s32.to.zero.pseudo %v734
        %v759 = vcvt.f32.s32.to.zero.pseudo %v735
        %v760 = vcvt.f32.s32.to.zero.pseudo %v736
        %v761 = vcvt.f32.s32.to.zero.pseudo %v737
        %v762 = vcvt.f32.s32.to.zero.pseudo %v738
        %v763 = vcvt.f32.s32.to.zero.pseudo %v739
        %v764 = vpack.c.b16 %v752, %v752
        %v765 = vpack.c.b8 %v764, %v764
        %v766 = vpack.c.b16 %v753, %v753
        %v767 = vpack.c.b8 %v766, %v766
        %v768 = vpack.c.b16 %v754, %v754
        %v769 = vpack.c.b8 %v768, %v768
        %v770 = vpack.c.b16 %v755, %v755
        %v771 = vpack.c.b8 %v770, %v770
        %v772 = vpack.c.b16 %v756, %v756
        %v773 = vpack.c.b8 %v772, %v772
        %v774 = vpack.c.b16 %v757, %v757
        %v775 = vpack.c.b8 %v774, %v774
        %v776 = vpack.c.b16 %v758, %v758
        %v777 = vpack.c.b8 %v776, %v776
        %v778 = vpack.c.b16 %v759, %v759
        %v779 = vpack.c.b8 %v778, %v778
        %v780 = vpack.c.b16 %v760, %v760
        %v781 = vpack.c.b8 %v780, %v780
        %v782 = vpack.c.b16 %v761, %v761
        %v783 = vpack.c.b8 %v782, %v782
        %v784 = vpack.c.b16 %v762, %v762
        %v785 = vpack.c.b8 %v784, %v784
        %v786 = vpack.c.b16 %v763, %v763
        %v787 = vpack.c.b8 %v786, %v786
        %788 = vst [vmem:[%s334] sm:$0x3] %v765
        %789 = vst [vmem:[%s334 + $0x2] sm:$0x3] %v767
        %790 = vst [vmem:[%s334 + $0x4] sm:$0x3] %v769
        %791 = vst [vmem:[%s334 + $0x6] sm:$0x3] %v771
        %792 = vst [vmem:[%s334 + $0x10] sm:$0x3] %v773
        %793 = vst [vmem:[%s334 + $0x12] sm:$0x3] %v775
        %794 = vst [vmem:[%s334 + $0x14] sm:$0x3] %v777
        %795 = vst [vmem:[%s334 + $0x16] sm:$0x3] %v779
        %796 = vst [vmem:[%s334 + $0x20] sm:$0x3] %v781
        %797 = vst [vmem:[%s334 + $0x22] sm:$0x3] %v783
        %798 = vst [vmem:[%s334 + $0x24] sm:$0x3] %v785
        %799 = vst [vmem:[%s334 + $0x26] sm:$0x3] %v787
        %v800 = vcvt.f32.s32.to.zero.pseudo %v740
        %v801 = vcvt.f32.s32.to.zero.pseudo %v741
        %v802 = vcvt.f32.s32.to.zero.pseudo %v742
        %v803 = vcvt.f32.s32.to.zero.pseudo %v743
        %v804 = vcvt.f32.s32.to.zero.pseudo %v744
        %v805 = vcvt.f32.s32.to.zero.pseudo %v745
        %v806 = vcvt.f32.s32.to.zero.pseudo %v746
        %v807 = vcvt.f32.s32.to.zero.pseudo %v747
        %v808 = vcvt.f32.s32.to.zero.pseudo %v748
        %v809 = vcvt.f32.s32.to.zero.pseudo %v749
        %v810 = vcvt.f32.s32.to.zero.pseudo %v750
        %v811 = vcvt.f32.s32.to.zero.pseudo %v751
        %v812 = vpack.c.b16 %v800, %v800
        %v813 = vpack.c.b8 %v812, %v812
        %v814 = vpack.c.b16 %v801, %v801
        %v815 = vpack.c.b8 %v814, %v814
        %v816 = vpack.c.b16 %v802, %v802
        %v817 = vpack.c.b8 %v816, %v816
        %v818 = vpack.c.b16 %v803, %v803
        %v819 = vpack.c.b8 %v818, %v818
        %v820 = vpack.c.b16 %v804, %v804
        %v821 = vpack.c.b8 %v820, %v820
        %v822 = vpack.c.b16 %v805, %v805
        %v823 = vpack.c.b8 %v822, %v822
        %v824 = vpack.c.b16 %v806, %v806
        %v825 = vpack.c.b8 %v824, %v824
        %v826 = vpack.c.b16 %v807, %v807
        %v827 = vpack.c.b8 %v826, %v826
        %v828 = vpack.c.b16 %v808, %v808
        %v829 = vpack.c.b8 %v828, %v828
        %v830 = vpack.c.b16 %v809, %v809
        %v831 = vpack.c.b8 %v830, %v830
        %v832 = vpack.c.b16 %v810, %v810
        %v833 = vpack.c.b8 %v832, %v832
        %v834 = vpack.c.b16 %v811, %v811
        %v835 = vpack.c.b8 %v834, %v834
        %s836 = scalar_lea.vmem %s334, 8 [#allocation7]
        %837 = vst [vmem:[%s836] sm:$0x3] %v813
        %838 = vst [vmem:[%s836 + $0x2] sm:$0x3] %v815
        %839 = vst [vmem:[%s836 + $0x4] sm:$0x3] %v817
        %840 = vst [vmem:[%s836 + $0x6] sm:$0x3] %v819
        %841 = vst [vmem:[%s836 + $0x10] sm:$0x3] %v821
        %842 = vst [vmem:[%s836 + $0x12] sm:$0x3] %v823
        %843 = vst [vmem:[%s836 + $0x14] sm:$0x3] %v825
        %844 = vst [vmem:[%s836 + $0x16] sm:$0x3] %v827
        %845 = vst [vmem:[%s836 + $0x20] sm:$0x3] %v829
        %846 = vst [vmem:[%s836 + $0x22] sm:$0x3] %v831
        %847 = vst [vmem:[%s836 + $0x24] sm:$0x3] %v833
        %848 = vst [vmem:[%s836 + $0x26] sm:$0x3] %v835
        %s849 = sand.u32 %s142, 1
        %s850 = sand.u32 %s142, 1
        %s851 = smul.addr %s850, 48
        %s852 = scalar_lea.vmem [#allocation7], %s851
        // Predicated region
        $region45: #{upsample_video.1} parent=31 // pred_check
          %p853 = pneg %p152
        $region46: #{upsample_video.1} parent=31 // pred_check_branch
          %855 = sbr.rel (%p853) target = $region48
        $region47: #{upsample_video.1} parent=31 // pred_region
          %s856 = smul.u32 4, %s25
          %s857 = smul.addr %s24, 48
          %s858 = sadd.s32 %s856, %s857
          %s859 = smul.addr %s858, 2
          %s860 = scalar_lea.vmem %s3, %s859
          // Predicated region
          $region49: #{upsample_video.1} parent=47 // pred_check
            _
          $region50: #{upsample_video.1} parent=47 // pred_check_branch
            %862 = sbr.rel (0) target = $region52
          $region51: #{upsample_video.1} parent=47 // pred_region
            // Predicated region
            $region53: #{upsample_video.1} parent=51 // pred_check
              _
            $region54: #{upsample_video.1} parent=51 // pred_check_branch
              %864 = sbr.rel target = $region56
            $region55: #{upsample_video.1} parent=51 // pred_region
              // Predicated region
              $region68: #{upsample_video.1} parent=55 // pred_check
                _
              $region69: #{upsample_video.1} parent=55 // pred_check_branch
                %926 = sbr.rel (0) target = $region71
              $region70: #{upsample_video.1} parent=55 // pred_region
                loop: start=0, step=1, limit=1
                $region72: #{upsample_video.1} parent=70 // loop_pre_header
                  _
                $region73: #{upsample_video.1} parent=70 // loop_header
                  %s928 = sphi 0, %s932
                  %p929 = scmp.ge.s32.totalorder %s928, 1
                  %s933 = sphi %s852, %s852
                  %s934 = sphi %s860, %s860
                $region74: #{upsample_video.1} parent=70 // loop_header_branch
                  %931 = sbr.rel (%p929) target = $region78
                $region75: #{upsample_video.1} parent=70 // loop_body
                  _
                $region76: #{upsample_video.1} parent=70 // loop_footer
                  %s932 = sadd.s32 1, %s928
                $region77: #{upsample_video.1} parent=70 // loop_footer_branch
                  %927 = sbr.rel target = $region73
                $region78: #{upsample_video.1} parent=70 // loop_exit
                  _
                %s936 = ssub.s32 4, 1
                loop: start=0, step=1, limit=1
                $region79: #{upsample_video.1} parent=70 // loop_pre_header
                  _
                $region80: #{upsample_video.1} parent=70 // loop_header
                  %s938 = sphi 0, %s942
                  %p939 = scmp.ge.s32.totalorder %s938, 1
                  %s943 = sphi %s852, %s852
                  %s944 = sphi %s860, %s860
                $region81: #{upsample_video.1} parent=70 // loop_header_branch
                  %941 = sbr.rel (%p939) target = $region85
                $region82: #{upsample_video.1} parent=70 // loop_body
                  %v945 = vld [vmem:[%s943] sm:%s936]
                  %946 = vst [vmem:[%s944] sm:%s936] %v945
                  %v947 = vld [vmem:[%s943 + $0x2] sm:%s936]
                  %948 = vst [vmem:[%s944 + $0x2] sm:%s936] %v947
                  %v949 = vld [vmem:[%s943 + $0x4] sm:%s936]
                  %950 = vst [vmem:[%s944 + $0x4] sm:%s936] %v949
                  %v951 = vld [vmem:[%s943 + $0x6] sm:%s936]
                  %952 = vst [vmem:[%s944 + $0x6] sm:%s936] %v951
                  %v953 = vld [vmem:[%s943 + $0x8] sm:%s936]
                  %954 = vst [vmem:[%s944 + $0x10] sm:%s936] %v953
                  %v955 = vld [vmem:[%s943 + $0xa] sm:%s936]
                  %956 = vst [vmem:[%s944 + $0x12] sm:%s936] %v955
                  %v957 = vld [vmem:[%s943 + $0xc] sm:%s936]
                  %958 = vst [vmem:[%s944 + $0x14] sm:%s936] %v957
                  %v959 = vld [vmem:[%s943 + $0xe] sm:%s936]
                  %960 = vst [vmem:[%s944 + $0x16] sm:%s936] %v959
                  %v961 = vld [vmem:[%s943 + $0x10] sm:%s936]
                  %962 = vst [vmem:[%s944 + $0x20] sm:%s936] %v961
                  %v963 = vld [vmem:[%s943 + $0x12] sm:%s936]
                  %964 = vst [vmem:[%s944 + $0x22] sm:%s936] %v963
                  %v965 = vld [vmem:[%s943 + $0x14] sm:%s936]
                  %966 = vst [vmem:[%s944 + $0x24] sm:%s936] %v965
                  %v967 = vld [vmem:[%s943 + $0x16] sm:%s936]
                  %968 = vst [vmem:[%s944 + $0x26] sm:%s936] %v967
                  %v969 = vld [vmem:[%s943 + $0x18] sm:%s936]
                  %970 = vst [vmem:[%s944 + $0x30] sm:%s936] %v969
                  %v971 = vld [vmem:[%s943 + $0x1a] sm:%s936]
                  %972 = vst [vmem:[%s944 + $0x32] sm:%s936] %v971
                  %v973 = vld [vmem:[%s943 + $0x1c] sm:%s936]
                  %974 = vst [vmem:[%s944 + $0x34] sm:%s936] %v973
                  %v975 = vld [vmem:[%s943 + $0x1e] sm:%s936]
                  %976 = vst [vmem:[%s944 + $0x36] sm:%s936] %v975
                  %v977 = vld [vmem:[%s943 + $0x20] sm:%s936]
                  %978 = vst [vmem:[%s944 + $0x40] sm:%s936] %v977
                  %v979 = vld [vmem:[%s943 + $0x22] sm:%s936]
                  %980 = vst [vmem:[%s944 + $0x42] sm:%s936] %v979
                  %v981 = vld [vmem:[%s943 + $0x24] sm:%s936]
                  %982 = vst [vmem:[%s944 + $0x44] sm:%s936] %v981
                  %v983 = vld [vmem:[%s943 + $0x26] sm:%s936]
                  %984 = vst [vmem:[%s944 + $0x46] sm:%s936] %v983
                  %v985 = vld [vmem:[%s943 + $0x28] sm:%s936]
                  %986 = vst [vmem:[%s944 + $0x50] sm:%s936] %v985
                  %v987 = vld [vmem:[%s943 + $0x2a] sm:%s936]
                  %988 = vst [vmem:[%s944 + $0x52] sm:%s936] %v987
                  %v989 = vld [vmem:[%s943 + $0x2c] sm:%s936]
                  %990 = vst [vmem:[%s944 + $0x54] sm:%s936] %v989
                  %v991 = vld [vmem:[%s943 + $0x2e] sm:%s936]
                  %992 = vst [vmem:[%s944 + $0x56] sm:%s936] %v991
                $region83: #{upsample_video.1} parent=70 // loop_footer
                  %s942 = sadd.s32 1, %s938
                $region84: #{upsample_video.1} parent=70 // loop_footer_branch
                  %937 = sbr.rel target = $region80
                $region85: #{upsample_video.1} parent=70 // loop_exit
                  _
              $region71: #{upsample_video.1} parent=55 // pred_fallthru
                _
            $region56: #{upsample_video.1} parent=51 // pred_fallthru
              _
            // Predicated region
            $region57: #{upsample_video.1} parent=51 // pred_check
              _
            $region58: #{upsample_video.1} parent=51 // pred_check_branch
              %866 = sbr.rel (0) target = $region60
            $region59: #{upsample_video.1} parent=51 // pred_region
              %s868 = ssub.s32 4, 1
              loop: start=0, step=1, limit=1
              $region61: #{upsample_video.1} parent=59 // loop_pre_header
                _
              $region62: #{upsample_video.1} parent=59 // loop_header
                %s870 = sphi 0, %s874
                %p871 = scmp.ge.s32.totalorder %s870, 1
                %s875 = sphi %s852, %s852
                %s876 = sphi %s860, %s860
              $region63: #{upsample_video.1} parent=59 // loop_header_branch
                %873 = sbr.rel (%p871) target = $region67
              $region64: #{upsample_video.1} parent=59 // loop_body
                %v877 = vld [vmem:[%s875] sm:%s868]
                %878 = vst [vmem:[%s876] sm:%s868] %v877
                %v879 = vld [vmem:[%s875 + $0x2] sm:%s868]
                %880 = vst [vmem:[%s876 + $0x2] sm:%s868] %v879
                %v881 = vld [vmem:[%s875 + $0x4] sm:%s868]
                %882 = vst [vmem:[%s876 + $0x4] sm:%s868] %v881
                %v883 = vld [vmem:[%s875 + $0x6] sm:%s868]
                %884 = vst [vmem:[%s876 + $0x6] sm:%s868] %v883
                %v885 = vld [vmem:[%s875 + $0x8] sm:%s868]
                %886 = vst [vmem:[%s876 + $0x10] sm:%s868] %v885
                %v887 = vld [vmem:[%s875 + $0xa] sm:%s868]
                %888 = vst [vmem:[%s876 + $0x12] sm:%s868] %v887
                %v889 = vld [vmem:[%s875 + $0xc] sm:%s868]
                %890 = vst [vmem:[%s876 + $0x14] sm:%s868] %v889
                %v891 = vld [vmem:[%s875 + $0xe] sm:%s868]
                %892 = vst [vmem:[%s876 + $0x16] sm:%s868] %v891
                %v893 = vld [vmem:[%s875 + $0x10] sm:%s868]
                %894 = vst [vmem:[%s876 + $0x20] sm:%s868] %v893
                %v895 = vld [vmem:[%s875 + $0x12] sm:%s868]
                %896 = vst [vmem:[%s876 + $0x22] sm:%s868] %v895
                %v897 = vld [vmem:[%s875 + $0x14] sm:%s868]
                %898 = vst [vmem:[%s876 + $0x24] sm:%s868] %v897
                %v899 = vld [vmem:[%s875 + $0x16] sm:%s868]
                %900 = vst [vmem:[%s876 + $0x26] sm:%s868] %v899
                %v901 = vld [vmem:[%s875 + $0x18] sm:%s868]
                %902 = vst [vmem:[%s876 + $0x30] sm:%s868] %v901
                %v903 = vld [vmem:[%s875 + $0x1a] sm:%s868]
                %904 = vst [vmem:[%s876 + $0x32] sm:%s868] %v903
                %v905 = vld [vmem:[%s875 + $0x1c] sm:%s868]
                %906 = vst [vmem:[%s876 + $0x34] sm:%s868] %v905
                %v907 = vld [vmem:[%s875 + $0x1e] sm:%s868]
                %908 = vst [vmem:[%s876 + $0x36] sm:%s868] %v907
                %v909 = vld [vmem:[%s875 + $0x20] sm:%s868]
                %910 = vst [vmem:[%s876 + $0x40] sm:%s868] %v909
                %v911 = vld [vmem:[%s875 + $0x22] sm:%s868]
                %912 = vst [vmem:[%s876 + $0x42] sm:%s868] %v911
                %v913 = vld [vmem:[%s875 + $0x24] sm:%s868]
                %914 = vst [vmem:[%s876 + $0x44] sm:%s868] %v913
                %v915 = vld [vmem:[%s875 + $0x26] sm:%s868]
                %916 = vst [vmem:[%s876 + $0x46] sm:%s868] %v915
                %v917 = vld [vmem:[%s875 + $0x28] sm:%s868]
                %918 = vst [vmem:[%s876 + $0x50] sm:%s868] %v917
                %v919 = vld [vmem:[%s875 + $0x2a] sm:%s868]
                %920 = vst [vmem:[%s876 + $0x52] sm:%s868] %v919
                %v921 = vld [vmem:[%s875 + $0x2c] sm:%s868]
                %922 = vst [vmem:[%s876 + $0x54] sm:%s868] %v921
                %v923 = vld [vmem:[%s875 + $0x2e] sm:%s868]
                %924 = vst [vmem:[%s876 + $0x56] sm:%s868] %v923
              $region65: #{upsample_video.1} parent=59 // loop_footer
                %s874 = sadd.s32 1, %s870
              $region66: #{upsample_video.1} parent=59 // loop_footer_branch
                %869 = sbr.rel target = $region62
              $region67: #{upsample_video.1} parent=59 // loop_exit
                _
            $region60: #{upsample_video.1} parent=51 // pred_fallthru
              _
          $region52: #{upsample_video.1} parent=47 // pred_fallthru
            _
          %993 = vnop
        $region48: #{upsample_video.1} parent=31 // pred_fallthru
          _
      $region32: #{upsample_video.1} parent=5 // pred_fallthru
        _
      %p994 = scmp.le.s32.totalorder 2, %s15
      // Predicated region
      $region86: #{upsample_video.1} parent=5 // pred_check
        %p995 = pneg %p994
      $region87: #{upsample_video.1} parent=5 // pred_check_branch
        %997 = sbr.rel (%p995) target = $region89
      $region88: #{upsample_video.1} parent=5 // pred_region
        %s998 = ssub.s32 %s15, 2
        // Predicated region
        $region90: #{upsample_video.1} parent=88 // pred_check
          %p999 = pneg %p158
        $region91: #{upsample_video.1} parent=88 // pred_check_branch
          %1001 = sbr.rel (%p999) target = $region93
        $region92: #{upsample_video.1} parent=88 // pred_region
          %s1002 = sand.u32 %s143, 1
          %s1003 = sand.u32 %s143, 1
          %s1004 = smul.addr %s1003, 48
          %s1005 = scalar_lea.vmem [#allocation7], %s1004
        $region93: #{upsample_video.1} parent=88 // pred_fallthru
          _
      $region89: #{upsample_video.1} parent=5 // pred_fallthru
        _
    $region6: #{upsample_video.1} parent=1 // loop_footer
      %s19 = sadd.s32 1, %s15
    $region7: #{upsample_video.1} parent=1 // loop_footer_branch
      %14 = sbr.rel target = $region3
    $region8: #{upsample_video.1} parent=1 // loop_exit
      _
    %1006 = vsyncpa [#allocation3], 1
    %s1007 = scalar_lea.sflag [#allocation3], 1
    %1008 = vsyncpa %s1007, 1
    %1009 = vsyncpa [#allocation5], 1
    %s1010 = scalar_lea.sflag [#allocation5], 1
    %1011 = vsyncpa %s1010, 1

</llo_original>
